<compile_context>
chip_gen: v5e
topology: v5e:2x2
jax: 0.10.0
libtpu: 0.0.40
codegen_flags: <defaults>
</compile_context>

<pallas_src>
import functools

import jax
import jax.numpy as jnp
from jax import lax
from jax.experimental import pallas as pl
from jax.experimental.pallas import tpu as pltpu


def _round_up(x, m):
    return (x + m - 1) // m * m


def _device_info():
    """(is_pre_v6_generation, physical_vmem_bytes) with safe fallbacks."""
    kind = ""
    try:
        kind = jax.devices()[0].device_kind.lower()
    except Exception:
        pass
    is_old_gen = any(t in kind for t in ("v2", "v3", "v4", "v5"))
    try:
        vmem_bytes = int(pltpu.get_tpu_info().vmem_capacity_bytes)
    except Exception:
        vmem_bytes = (64 << 20) if "v7" in kind else (128 << 20)
    return is_old_gen, vmem_bytes


# ----------------------------------------------------------------------------
# Pallas kernel: applies L successive LayerNorms (each with its own weight,
# bias and eps) to a tile of rows.  The layer loop is unrolled statically.
# ----------------------------------------------------------------------------
def _encoder_kernel(x_ref, w_ref, b_ref, o_ref, *, eps_per_layer, compute_dtype):
    cd = compute_dtype
    h = x_ref[...].astype(cd)                 # (rt, H) elementwise working copy
    w_all = w_ref[...]                        # (L, H), pre-cast on host
    b_all = b_ref[...]                        # (L, H)
    inv_h = jnp.float32(1.0 / h.shape[-1])
    for l, eps in enumerate(eps_per_layer):
        # Moments always in f32 (single pass over the tile).
        hf = h.astype(jnp.float32)
        s1 = jnp.sum(hf, axis=-1, keepdims=True)
        s2 = jnp.sum(hf * hf, axis=-1, keepdims=True)
        mean = s1 * inv_h
        var = jnp.maximum(s2 * inv_h - mean * mean, jnp.float32(0.0))
        inv = lax.rsqrt(var + jnp.float32(eps))
        # Normalize + affine in the (possibly bf16) compute dtype.
        h = ((h - mean.astype(cd)) * inv.astype(cd)) * w_all[l][None, :] \
            + b_all[l][None, :]
    o_ref[...] = h.astype(o_ref.dtype)


def bert_encoder_forward(hidden_states, weights, biases, eps_per_layer,
                         *, row_tile=1024, compute_dtype=None,
                         vmem_limit_bytes=None):
    """hidden_states: (B, S, H); weights/biases: (L, H); eps_per_layer: len L."""
    B, S, H = hidden_states.shape
    L = weights.shape[0]
    N = B * S
    x2d = hidden_states.reshape(N, H)

    is_old_gen, vmem_capacity = _device_info()

    # Elementwise compute dtype: bf16 only when the I/O is already bf16 and
    # the chip has a bf16 VALU (v6e/v7x); otherwise f32.
    if compute_dtype is None:
        if hidden_states.dtype == jnp.bfloat16 and not is_old_gen:
            compute_dtype = jnp.bfloat16
        else:
            compute_dtype = jnp.float32
    compute_dtype = jnp.dtype(compute_dtype)

    # Effective row tile: multiple of 8, no larger than the (rounded) row
    # count; keep >=2 grid steps when rows permit so the "parallel" axis
    # actually shards across v7x's two TensorCores.
    rt = min(int(row_tile), _round_up(N, 8))
    if N > 8:
        rt = min(rt, _round_up(pl.cdiv(N, 2), 8))
    rt = max(8, _round_up(rt, 8))
    grid = pl.cdiv(N, rt)

    # Pre-cast affine params on the host (removes per-tile casts in-kernel).
    w = weights.astype(compute_dtype)
    b = biases.astype(compute_dtype)

    if vmem_limit_bytes is None:
        io_bytes = jnp.dtype(hidden_states.dtype).itemsize
        tile_io = rt * H * io_bytes
        # 2x double-buffered input + 2x output tiles in I/O dtype, ~3 f32-tile
        # equivalents of compiler scratch for the unrolled working set,
        # weights/biases, plus slack.
        needed = 4 * tile_io + 3 * rt * H * 4 + 2 * L * H * 4 + (2 << 20)
        cap = max(32 << 20, (vmem_capacity * 3) // 4)
        cap = min(cap, vmem_capacity - (4 << 20))
        vmem_limit_bytes = int(min(max(needed, 32 << 20), cap))

    kernel = functools.partial(
        _encoder_kernel,
        eps_per_layer=tuple(float(e) for e in eps_per_layer),
        compute_dtype=compute_dtype)

    out2d = pl.pallas_call(
        kernel,
        out_shape=jax.ShapeDtypeStruct((N, H), hidden_states.dtype),
        grid_spec=pltpu.PrefetchScalarGridSpec(
            num_scalar_prefetch=0,
            grid=(grid,),
            in_specs=[
                pl.BlockSpec((rt, H), lambda i: (i, 0)),   # x tile
                pl.BlockSpec((L, H), lambda i: (0, 0)),    # all weights
                pl.BlockSpec((L, H), lambda i: (0, 0)),    # all biases
            ],
            out_specs=pl.BlockSpec((rt, H), lambda i: (i, 0)),
        ),
        compiler_params=pltpu.CompilerParams(
            dimension_semantics=("parallel",),
            vmem_limit_bytes=vmem_limit_bytes),
    )(x2d, w, b)

    return out2d.reshape(B, S, H)


# ----------------------------------------------------------------------------
# Pure-JAX reference (for a sanity check).
# ----------------------------------------------------------------------------
def _reference(hidden_states, weights, biases, eps_per_layer):
    h = hidden_states.astype(jnp.float32)
    for l in range(weights.shape[0]):
        mean = jnp.mean(h, axis=-1, keepdims=True)
        var = jnp.mean((h - mean) ** 2, axis=-1, keepdims=True)
        h = (h - mean) / jnp.sqrt(var + eps_per_layer[l])
        h = h * weights[l] + biases[l]
    return h.astype(hidden_states.dtype)


if __name__ == "__main__":
    # "config": num_hidden_layers, add_layers, hidden_size
    num_hidden_layers = 4
    add_layers = (1, 3)           # these layers get eps = float(True) = 1.0
    hidden_size = 32
    batch, seq = 2, 8

    eps_per_layer = [1.0 if i in add_layers else 0.0
                     for i in range(num_hidden_layers)]

    key = jax.random.PRNGKey(0)
    k_x, k_w, k_b, k_x2 = jax.random.split(key, 4)

    hidden_states = jax.random.normal(k_x, (batch, seq, hidden_size),
                                      dtype=jnp.float32)
    # Deterministic per-layer affine params (elementwise_affine=True):
    weights = 1.0 + 0.05 * jax.random.normal(
        k_w, (num_hidden_layers, hidden_size), dtype=jnp.float32)
    biases = 0.05 * jax.random.normal(
        k_b, (num_hidden_layers, hidden_size), dtype=jnp.float32)

    # Main check (f32 I/O, exact-multiple row count).
    out = bert_encoder_forward(hidden_states, weights, biases, eps_per_layer)
    out = jax.block_until_ready(out)
    ref = _reference(hidden_states, weights, biases, eps_per_layer)
    assert out.shape == (batch, seq, hidden_size)
    assert jnp.allclose(out, ref, atol=1e-4, rtol=1e-4), "mismatch vs reference"

    # Ragged row count (N=21): exercised directly by the partial last block,
    # no host-side pad/slice.
    hs2 = jax.random.normal(k_x2, (3, 7, hidden_size), dtype=jnp.float32)
    out2 = bert_encoder_forward(hs2, weights, biases, eps_per_layer)
    out2 = jax.block_until_ready(out2)
    ref2 = _reference(hs2, weights, biases, eps_per_layer)
    assert out2.shape == (3, 7, hidden_size)
    assert jnp.allclose(out2, ref2, atol=1e-4, rtol=1e-4), "mismatch (ragged)"

    # bf16 I/O path (halved HBM traffic; bf16 elementwise on v6e/v7x).
    hs_bf = hidden_states.astype(jnp.bfloat16)
    out_bf = bert_encoder_forward(hs_bf, weights, biases, eps_per_layer)
    out_bf = jax.block_until_ready(out_bf)
    ref_bf = _reference(hs_bf, weights, biases, eps_per_layer)
    assert out_bf.shape == (batch, seq, hidden_size)
    assert bool(jnp.all(jnp.isfinite(out_bf.astype(jnp.float32))))
    assert jnp.allclose(out_bf.astype(jnp.float32),
                        ref_bf.astype(jnp.float32),
                        atol=1e-1, rtol=1e-1), "mismatch (bf16)"

    print("KERNEL_OK")
</pallas_src>

<mosaic_0001>
module attributes {stable_mosaic.version = 11 : i64} {
  func.func @_encoder_kernel(%arg0: i32, %arg1: memref<8x32xf32, #tpu.memory_space<vmem>>, %arg2: memref<4x32xf32, #tpu.memory_space<vmem>>, %arg3: memref<4x32xf32, #tpu.memory_space<vmem>>, %arg4: memref<8x32xf32, #tpu.memory_space<vmem>>) attributes {dimension_semantics = [#tpu.dimension_semantics<parallel>], iteration_bounds = array<i64: 2>, scalar_prefetch = 0 : i64, scratch_operands = 0 : i64, tpu.core_type = #tpu.core_type<tc>, window_params = [{transform_indices = @transform_0, window_bounds = array<i64: 8, 32>}, {pipeline_mode = #tpu.pipeline_mode<synchronous>, transform_indices = @transform_1, window_bounds = array<i64: 4, 32>}, {pipeline_mode = #tpu.pipeline_mode<synchronous>, transform_indices = @transform_2, window_bounds = array<i64: 4, 32>}, {transform_indices = @transform_3, window_bounds = array<i64: 8, 32>}]} {
    %c0 = arith.constant 0 : index
    %c0_0 = arith.constant 0 : index
    %0 = vector.load %arg1[%c0, %c0_0] : memref<8x32xf32, #tpu.memory_space<vmem>>, vector<8x32xf32>
    %c0_1 = arith.constant 0 : index
    %c0_2 = arith.constant 0 : index
    %1 = vector.load %arg2[%c0_1, %c0_2] : memref<4x32xf32, #tpu.memory_space<vmem>>, vector<4x32xf32>
    %c0_3 = arith.constant 0 : index
    %c0_4 = arith.constant 0 : index
    %2 = vector.load %arg3[%c0_3, %c0_4] : memref<4x32xf32, #tpu.memory_space<vmem>>, vector<4x32xf32>
    %cst = arith.constant dense<0.000000e+00> : vector<8xf32>
    %3 = vector.multi_reduction <add>, %0, %cst [1] : vector<8x32xf32> to vector<8xf32>
    %4 = vector.shape_cast %3 : vector<8xf32> to vector<8x1xf32>
    %5 = arith.mulf %0, %0 : vector<8x32xf32>
    %cst_5 = arith.constant dense<0.000000e+00> : vector<8xf32>
    %6 = vector.multi_reduction <add>, %5, %cst_5 [1] : vector<8x32xf32> to vector<8xf32>
    %7 = vector.shape_cast %6 : vector<8xf32> to vector<8x1xf32>
    %cst_6 = arith.constant 3.125000e-02 : f32
    %8 = vector.broadcast %cst_6 : f32 to vector<8x1xf32>
    %9 = arith.mulf %4, %8 : vector<8x1xf32>
    %cst_7 = arith.constant 3.125000e-02 : f32
    %10 = vector.broadcast %cst_7 : f32 to vector<8x1xf32>
    %11 = arith.mulf %7, %10 : vector<8x1xf32>
    %12 = arith.mulf %9, %9 : vector<8x1xf32>
    %13 = arith.subf %11, %12 : vector<8x1xf32>
    %cst_8 = arith.constant 0.000000e+00 : f32
    %14 = vector.broadcast %cst_8 : f32 to vector<8x1xf32>
    %15 = arith.maximumf %13, %14 : vector<8x1xf32>
    %cst_9 = arith.constant 0.000000e+00 : f32
    %16 = vector.broadcast %cst_9 : f32 to vector<8x1xf32>
    %17 = arith.addf %15, %16 : vector<8x1xf32>
    %18 = math.rsqrt %17 : vector<8x1xf32>
    %19 = vector.broadcast %9 : vector<8x1xf32> to vector<8x32xf32>
    %20 = arith.subf %0, %19 : vector<8x32xf32>
    %21 = vector.broadcast %18 : vector<8x1xf32> to vector<8x32xf32>
    %22 = arith.mulf %20, %21 : vector<8x32xf32>
    %23 = vector.extract_strided_slice %1 {offsets = [0, 0], sizes = [1, 32], strides = [1, 1]} : vector<4x32xf32> to vector<1x32xf32>
    %24 = vector.shape_cast %23 : vector<1x32xf32> to vector<32xf32>
    %25 = vector.shape_cast %24 : vector<32xf32> to vector<1x32xf32>
    %26 = vector.broadcast %25 : vector<1x32xf32> to vector<8x32xf32>
    %27 = arith.mulf %22, %26 : vector<8x32xf32>
    %28 = vector.extract_strided_slice %2 {offsets = [0, 0], sizes = [1, 32], strides = [1, 1]} : vector<4x32xf32> to vector<1x32xf32>
    %29 = vector.shape_cast %28 : vector<1x32xf32> to vector<32xf32>
    %30 = vector.shape_cast %29 : vector<32xf32> to vector<1x32xf32>
    %31 = vector.broadcast %30 : vector<1x32xf32> to vector<8x32xf32>
    %32 = arith.addf %27, %31 : vector<8x32xf32>
    %cst_10 = arith.constant dense<0.000000e+00> : vector<8xf32>
    %33 = vector.multi_reduction <add>, %32, %cst_10 [1] : vector<8x32xf32> to vector<8xf32>
    %34 = vector.shape_cast %33 : vector<8xf32> to vector<8x1xf32>
    %35 = arith.mulf %32, %32 : vector<8x32xf32>
    %cst_11 = arith.constant dense<0.000000e+00> : vector<8xf32>
    %36 = vector.multi_reduction <add>, %35, %cst_11 [1] : vector<8x32xf32> to vector<8xf32>
    %37 = vector.shape_cast %36 : vector<8xf32> to vector<8x1xf32>
    %cst_12 = arith.constant 3.125000e-02 : f32
    %38 = vector.broadcast %cst_12 : f32 to vector<8x1xf32>
    %39 = arith.mulf %34, %38 : vector<8x1xf32>
    %cst_13 = arith.constant 3.125000e-02 : f32
    %40 = vector.broadcast %cst_13 : f32 to vector<8x1xf32>
    %41 = arith.mulf %37, %40 : vector<8x1xf32>
    %42 = arith.mulf %39, %39 : vector<8x1xf32>
    %43 = arith.subf %41, %42 : vector<8x1xf32>
    %cst_14 = arith.constant 0.000000e+00 : f32
    %44 = vector.broadcast %cst_14 : f32 to vector<8x1xf32>
    %45 = arith.maximumf %43, %44 : vector<8x1xf32>
    %cst_15 = arith.constant 1.000000e+00 : f32
    %46 = vector.broadcast %cst_15 : f32 to vector<8x1xf32>
    %47 = arith.addf %45, %46 : vector<8x1xf32>
    %48 = math.rsqrt %47 : vector<8x1xf32>
    %49 = vector.broadcast %39 : vector<8x1xf32> to vector<8x32xf32>
    %50 = arith.subf %32, %49 : vector<8x32xf32>
    %51 = vector.broadcast %48 : vector<8x1xf32> to vector<8x32xf32>
    %52 = arith.mulf %50, %51 : vector<8x32xf32>
    %53 = vector.extract_strided_slice %1 {offsets = [1, 0], sizes = [1, 32], strides = [1, 1]} : vector<4x32xf32> to vector<1x32xf32>
    %54 = vector.shape_cast %53 : vector<1x32xf32> to vector<32xf32>
    %55 = vector.shape_cast %54 : vector<32xf32> to vector<1x32xf32>
    %56 = vector.broadcast %55 : vector<1x32xf32> to vector<8x32xf32>
    %57 = arith.mulf %52, %56 : vector<8x32xf32>
    %58 = vector.extract_strided_slice %2 {offsets = [1, 0], sizes = [1, 32], strides = [1, 1]} : vector<4x32xf32> to vector<1x32xf32>
    %59 = vector.shape_cast %58 : vector<1x32xf32> to vector<32xf32>
    %60 = vector.shape_cast %59 : vector<32xf32> to vector<1x32xf32>
    %61 = vector.broadcast %60 : vector<1x32xf32> to vector<8x32xf32>
    %62 = arith.addf %57, %61 : vector<8x32xf32>
    %cst_16 = arith.constant dense<0.000000e+00> : vector<8xf32>
    %63 = vector.multi_reduction <add>, %62, %cst_16 [1] : vector<8x32xf32> to vector<8xf32>
    %64 = vector.shape_cast %63 : vector<8xf32> to vector<8x1xf32>
    %65 = arith.mulf %62, %62 : vector<8x32xf32>
    %cst_17 = arith.constant dense<0.000000e+00> : vector<8xf32>
    %66 = vector.multi_reduction <add>, %65, %cst_17 [1] : vector<8x32xf32> to vector<8xf32>
    %67 = vector.shape_cast %66 : vector<8xf32> to vector<8x1xf32>
    %cst_18 = arith.constant 3.125000e-02 : f32
    %68 = vector.broadcast %cst_18 : f32 to vector<8x1xf32>
    %69 = arith.mulf %64, %68 : vector<8x1xf32>
    %cst_19 = arith.constant 3.125000e-02 : f32
    %70 = vector.broadcast %cst_19 : f32 to vector<8x1xf32>
    %71 = arith.mulf %67, %70 : vector<8x1xf32>
    %72 = arith.mulf %69, %69 : vector<8x1xf32>
    %73 = arith.subf %71, %72 : vector<8x1xf32>
    %cst_20 = arith.constant 0.000000e+00 : f32
    %74 = vector.broadcast %cst_20 : f32 to vector<8x1xf32>
    %75 = arith.maximumf %73, %74 : vector<8x1xf32>
    %cst_21 = arith.constant 0.000000e+00 : f32
    %76 = vector.broadcast %cst_21 : f32 to vector<8x1xf32>
    %77 = arith.addf %75, %76 : vector<8x1xf32>
    %78 = math.rsqrt %77 : vector<8x1xf32>
    %79 = vector.broadcast %69 : vector<8x1xf32> to vector<8x32xf32>
    %80 = arith.subf %62, %79 : vector<8x32xf32>
    %81 = vector.broadcast %78 : vector<8x1xf32> to vector<8x32xf32>
    %82 = arith.mulf %80, %81 : vector<8x32xf32>
    %83 = vector.extract_strided_slice %1 {offsets = [2, 0], sizes = [1, 32], strides = [1, 1]} : vector<4x32xf32> to vector<1x32xf32>
    %84 = vector.shape_cast %83 : vector<1x32xf32> to vector<32xf32>
    %85 = vector.shape_cast %84 : vector<32xf32> to vector<1x32xf32>
    %86 = vector.broadcast %85 : vector<1x32xf32> to vector<8x32xf32>
    %87 = arith.mulf %82, %86 : vector<8x32xf32>
    %88 = vector.extract_strided_slice %2 {offsets = [2, 0], sizes = [1, 32], strides = [1, 1]} : vector<4x32xf32> to vector<1x32xf32>
    %89 = vector.shape_cast %88 : vector<1x32xf32> to vector<32xf32>
    %90 = vector.shape_cast %89 : vector<32xf32> to vector<1x32xf32>
    %91 = vector.broadcast %90 : vector<1x32xf32> to vector<8x32xf32>
    %92 = arith.addf %87, %91 : vector<8x32xf32>
    %cst_22 = arith.constant dense<0.000000e+00> : vector<8xf32>
    %93 = vector.multi_reduction <add>, %92, %cst_22 [1] : vector<8x32xf32> to vector<8xf32>
    %94 = vector.shape_cast %93 : vector<8xf32> to vector<8x1xf32>
    %95 = arith.mulf %92, %92 : vector<8x32xf32>
    %cst_23 = arith.constant dense<0.000000e+00> : vector<8xf32>
    %96 = vector.multi_reduction <add>, %95, %cst_23 [1] : vector<8x32xf32> to vector<8xf32>
    %97 = vector.shape_cast %96 : vector<8xf32> to vector<8x1xf32>
    %cst_24 = arith.constant 3.125000e-02 : f32
    %98 = vector.broadcast %cst_24 : f32 to vector<8x1xf32>
    %99 = arith.mulf %94, %98 : vector<8x1xf32>
    %cst_25 = arith.constant 3.125000e-02 : f32
    %100 = vector.broadcast %cst_25 : f32 to vector<8x1xf32>
    %101 = arith.mulf %97, %100 : vector<8x1xf32>
    %102 = arith.mulf %99, %99 : vector<8x1xf32>
    %103 = arith.subf %101, %102 : vector<8x1xf32>
    %cst_26 = arith.constant 0.000000e+00 : f32
    %104 = vector.broadcast %cst_26 : f32 to vector<8x1xf32>
    %105 = arith.maximumf %103, %104 : vector<8x1xf32>
    %cst_27 = arith.constant 1.000000e+00 : f32
    %106 = vector.broadcast %cst_27 : f32 to vector<8x1xf32>
    %107 = arith.addf %105, %106 : vector<8x1xf32>
    %108 = math.rsqrt %107 : vector<8x1xf32>
    %109 = vector.broadcast %99 : vector<8x1xf32> to vector<8x32xf32>
    %110 = arith.subf %92, %109 : vector<8x32xf32>
    %111 = vector.broadcast %108 : vector<8x1xf32> to vector<8x32xf32>
    %112 = arith.mulf %110, %111 : vector<8x32xf32>
    %113 = vector.extract_strided_slice %1 {offsets = [3, 0], sizes = [1, 32], strides = [1, 1]} : vector<4x32xf32> to vector<1x32xf32>
    %114 = vector.shape_cast %113 : vector<1x32xf32> to vector<32xf32>
    %115 = vector.shape_cast %114 : vector<32xf32> to vector<1x32xf32>
    %116 = vector.broadcast %115 : vector<1x32xf32> to vector<8x32xf32>
    %117 = arith.mulf %112, %116 : vector<8x32xf32>
    %118 = vector.extract_strided_slice %2 {offsets = [3, 0], sizes = [1, 32], strides = [1, 1]} : vector<4x32xf32> to vector<1x32xf32>
    %119 = vector.shape_cast %118 : vector<1x32xf32> to vector<32xf32>
    %120 = vector.shape_cast %119 : vector<32xf32> to vector<1x32xf32>
    %121 = vector.broadcast %120 : vector<1x32xf32> to vector<8x32xf32>
    %122 = arith.addf %117, %121 : vector<8x32xf32>
    %c0_28 = arith.constant 0 : index
    %c0_29 = arith.constant 0 : index
    %123 = vector.load %arg4[%c0_28, %c0_29] : memref<8x32xf32, #tpu.memory_space<vmem>>, vector<8x32xf32>
    tpu.vector_store %arg4[%c0_28, %c0_29], %122 {strides = array<i32>} : memref<8x32xf32, #tpu.memory_space<vmem>>, vector<8x32xf32>,
    return
  }
  func.func @transform_0(%arg0: i32) -> (i32, i32) {
    %c0_i32 = arith.constant 0 : i32
    %c0_i32_0 = arith.constant 0 : i32
    return %arg0, %c0_i32 : i32, i32
  }
  func.func @transform_1(%arg0: i32) -> (i32, i32) {
    %c0_i32 = arith.constant 0 : i32
    %c0_i32_0 = arith.constant 0 : i32
    %c0_i32_1 = arith.constant 0 : i32
    return %c0_i32, %c0_i32_0 : i32, i32
  }
  func.func @transform_2(%arg0: i32) -> (i32, i32) {
    %c0_i32 = arith.constant 0 : i32
    %c0_i32_0 = arith.constant 0 : i32
    %c0_i32_1 = arith.constant 0 : i32
    return %c0_i32, %c0_i32_0 : i32, i32
  }
  func.func @transform_3(%arg0: i32) -> (i32, i32) {
    %c0_i32 = arith.constant 0 : i32
    %c0_i32_0 = arith.constant 0 : i32
    return %arg0, %c0_i32 : i32, i32
  }
}

</mosaic_0001>

<llo_original>
// kernel: tpu_custom_call.1
$region0: #{tpu_custom_call.1}
  #allocation0 [shape = 'u32[]', space=smem, size = 0x4, offset = 0x4, fixed_abs, tag = 'smem constant byte address 0x4 - core index']
  #allocation1 [shape = 'u32[72,128]{1,0:T(1,128)}', space=vmem, size = 0x9000, scoped, tag = 'internal scratch']
  %s0 = inlined_call_operand.hbm [shape: f32[16,32], index: 0, kind: input, shape index: {}]
  %s1 = inlined_call_operand.hbm [shape: f32[4,32], index: 1, kind: input, shape index: {}]
  %s2 = inlined_call_operand.hbm [shape: f32[4,32], index: 2, kind: input, shape index: {}]
  %s3 = inlined_call_operand.hbm [shape: f32[16,32], index: 3, kind: output, shape index: {}]
  %s4 = sld [smem:[#allocation0]]
  $region57: #{tpu_custom_call.1} parent=0
    _
  %s6 = ssub.s32 1, %s4
  %s7 = scalar_select 0, %s6, %s4
  $region1: #{tpu_custom_call.1} parent=0
    #allocation2 [shape = 'u8[8192]{0}', space=vmem, size = 0x2000, scoped, tag = 'input window, operand 0']
    #allocation3 [shape = 's32[2]{0}', space=sflag, size = 0x8, scoped, tag = 'scoped memory for tpu_custom_call.1']
    #allocation4 [shape = 's32[2]{0}', space=sflag, size = 0x8, scoped, tag = 'scoped memory for tpu_custom_call.1']
    #allocation5 [shape = 'u8[2048]{0}', space=vmem, size = 0x800, scoped, tag = 'input window, operand 1, single buffered']
    #allocation6 [shape = 's32[1]{0}', space=sflag, size = 0x4, scoped, tag = 'scoped memory for tpu_custom_call.1']
    #allocation7 [shape = 'u8[2048]{0}', space=vmem, size = 0x800, scoped, tag = 'input window, operand 2, single buffered']
    #allocation8 [shape = 'u8[8192]{0}', space=vmem, size = 0x2000, scoped, tag = 'output window, operand 0']
    %8 = vsyncpa [#allocation3], 0
    %s9 = scalar_lea.sflag [#allocation3], 1
    %10 = vsyncpa %s9, 0
    %11 = vsyncpa [#allocation6], 0
    %12 = vsyncpa [#allocation4], 0
    %s13 = scalar_lea.sflag [#allocation4], 1
    %14 = vsyncpa %s13, 0
    loop: start=0, step=1, limit=4
    $region2: #{tpu_custom_call.1} parent=1 // loop_pre_header
      _
    $region3: #{tpu_custom_call.1} parent=1 // loop_header
      %s16 = sphi 0, %s20
      %p17 = scmp.ge.s32.totalorder %s16, 4
      %s26 = sphi 0, %s28
      %s29 = sphi 0, %s26
      %s30 = sphi 0, %s29
      %s46 = sphi 0, %s30
      %s50 = sphi 0, %s50
      %s52 = sphi 0, %s50
      %s53 = sphi 0, %s52
      %s67 = sphi 0, %s53
      %s71 = sphi 0, %s71
      %s73 = sphi 0, %s71
      %s74 = sphi 0, %s73
      %s88 = sphi 0, %s74
      %s94 = sphi 0, %s96
      %s97 = sphi 0, %s94
      %s98 = sphi 0, %s97
      %s114 = sphi 0, %s98
    $region4: #{tpu_custom_call.1} parent=1 // loop_header_branch
      %19 = sbr.rel (%p17) target = $region8
    $region5: #{tpu_custom_call.1} parent=1 // loop_body
      %s21 = ssub.s32 %s16, 1
      %s22 = ssub.s32 %s16, 2
      %s23 = sadd.s32 %s16, 1
      %s24 = ssub.s32 %s16, %s23
      %p25 = scmp.eq.s32.totalorder %s24, 0
      %s27 = sadd.s32 %s26, 1
      %s28 = scalar_select %p25, %s26, %s27
      %p31 = pneg %p25
      %p32 = scmp.eq.s32.totalorder %s16, 1
      %p33 = por %p31, %p32
      %p34 = scmp.ne.s32.totalorder %s26, %s29
      %p35 = scmp.eq.s32.totalorder %s16, 0
      %p36 = por %p34, %p35
      %p37 = scmp.ne.s32.totalorder %s26, %s29
      %p38 = scmp.eq.s32.totalorder %s21, 1
      %p39 = por %p37, %p38
      %p40 = scmp.ne.s32.totalorder %s29, %s30
      %p41 = scmp.eq.s32.totalorder %s21, 0
      %p42 = por %p40, %p41
      %p43 = scmp.ne.s32.totalorder %s29, %s30
      %p44 = scmp.eq.s32.totalorder %s22, 1
      %p45 = por %p43, %p44
      %p47 = scmp.ne.s32.totalorder %s30, %s46
      %p48 = scmp.eq.s32.totalorder %s22, 0
      %p49 = por %p47, %p48
      %s51 = sadd.s32 %s50, 1
      %p54 = scmp.eq.s32.totalorder %s16, 1
      %p55 = scmp.ne.s32.totalorder %s50, %s52
      %p56 = scmp.eq.s32.totalorder %s16, 0
      %p57 = por %p55, %p56
      %p58 = scmp.ne.s32.totalorder %s50, %s52
      %p59 = scmp.eq.s32.totalorder %s21, 1
      %p60 = por %p58, %p59
      %p61 = scmp.ne.s32.totalorder %s52, %s53
      %p62 = scmp.eq.s32.totalorder %s21, 0
      %p63 = por %p61, %p62
      %p64 = scmp.ne.s32.totalorder %s52, %s53
      %p65 = scmp.eq.s32.totalorder %s22, 1
      %p66 = por %p64, %p65
      %p68 = scmp.ne.s32.totalorder %s53, %s67
      %p69 = scmp.eq.s32.totalorder %s22, 0
      %p70 = por %p68, %p69
      %s72 = sadd.s32 %s71, 1
      %p75 = scmp.eq.s32.totalorder %s16, 1
      %p76 = scmp.ne.s32.totalorder %s71, %s73
      %p77 = scmp.eq.s32.totalorder %s16, 0
      %p78 = por %p76, %p77
      %p79 = scmp.ne.s32.totalorder %s71, %s73
      %p80 = scmp.eq.s32.totalorder %s21, 1
      %p81 = por %p79, %p80
      %p82 = scmp.ne.s32.totalorder %s73, %s74
      %p83 = scmp.eq.s32.totalorder %s21, 0
      %p84 = por %p82, %p83
      %p85 = scmp.ne.s32.totalorder %s73, %s74
      %p86 = scmp.eq.s32.totalorder %s22, 1
      %p87 = por %p85, %p86
      %p89 = scmp.ne.s32.totalorder %s74, %s88
      %p90 = scmp.eq.s32.totalorder %s22, 0
      %p91 = por %p89, %p90
      %s92 = ssub.s32 %s16, %s23
      %p93 = scmp.eq.s32.totalorder %s92, 0
      %s95 = sadd.s32 %s94, 1
      %s96 = scalar_select %p93, %s94, %s95
      %p99 = pneg %p93
      %p100 = scmp.eq.s32.totalorder %s16, 1
      %p101 = por %p99, %p100
      %p102 = scmp.ne.s32.totalorder %s94, %s97
      %p103 = scmp.eq.s32.totalorder %s16, 0
      %p104 = por %p102, %p103
      %p105 = scmp.ne.s32.totalorder %s94, %s97
      %p106 = scmp.eq.s32.totalorder %s21, 1
      %p107 = por %p105, %p106
      %p108 = scmp.ne.s32.totalorder %s97, %s98
      %p109 = scmp.eq.s32.totalorder %s21, 0
      %p110 = por %p108, %p109
      %p111 = scmp.ne.s32.totalorder %s97, %s98
      %p112 = scmp.eq.s32.totalorder %s22, 1
      %p113 = por %p111, %p112
      %p115 = scmp.ne.s32.totalorder %s98, %s114
      %p116 = scmp.eq.s32.totalorder %s22, 0
      %p117 = por %p115, %p116
      %p118 = scmp.le.s32.totalorder 1, %s16
      %p119 = scmp.lt.s32.totalorder %s16, 3
      %p120 = pnand %p118, %p119
      %p121 = pneg %p120
      // Predicated region
      $region9: #{tpu_custom_call.1} parent=5 // pred_check
        _
      $region10: #{tpu_custom_call.1} parent=5 // pred_check_branch
        %123 = sbr.rel (%p120) target = $region12
      $region11: #{tpu_custom_call.1} parent=5 // pred_region
        %s124 = ssub.s32 %s16, 1
        // Predicated region
        $region13: #{tpu_custom_call.1} parent=11 // pred_check
          %p125 = pneg %p63
        $region14: #{tpu_custom_call.1} parent=11 // pred_check_branch
          %127 = sbr.rel (%p125) target = $region16
        $region15: #{tpu_custom_call.1} parent=11 // pred_region
          %129 = vsyncadd [#allocation6], 0
          %s131 = sshll.u32 %s1, 4
          %s132 = int_to_ptr.hbm [resolvable:$true] %s131
          %s133 = sshll.u32 [#allocation5], 4
          %s134 = int_to_ptr.vmem [resolvable:$true] %s133
          %136 = dma.hbm_to_vmem [thread:$0]  %s132, 64, %s134, [#allocation6]
        $region16: #{tpu_custom_call.1} parent=11 // pred_fallthru
          _
        // Predicated region
        $region17: #{tpu_custom_call.1} parent=11 // pred_check
          %p137 = pneg %p84
        $region18: #{tpu_custom_call.1} parent=11 // pred_check_branch
          %139 = sbr.rel (%p137) target = $region20
        $region19: #{tpu_custom_call.1} parent=11 // pred_region
          %141 = vsyncadd [#allocation6], 0
          %s143 = sshll.u32 %s2, 4
          %s144 = int_to_ptr.hbm [resolvable:$true] %s143
          %s145 = sshll.u32 [#allocation7], 4
          %s146 = int_to_ptr.vmem [resolvable:$true] %s145
          %148 = dma.hbm_to_vmem [thread:$0]  %s144, 64, %s146, [#allocation6]
        $region20: #{tpu_custom_call.1} parent=11 // pred_fallthru
          _
      $region12: #{tpu_custom_call.1} parent=5 // pred_fallthru
        _
      %p149 = scmp.lt.s32.totalorder %s16, 2
      // Predicated region
      $region21: #{tpu_custom_call.1} parent=5 // pred_check
        %p150 = pneg %p149
      $region22: #{tpu_custom_call.1} parent=5 // pred_check_branch
        %152 = sbr.rel (%p150) target = $region24
      $region23: #{tpu_custom_call.1} parent=5 // pred_region
        // Predicated region
        $region25: #{tpu_custom_call.1} parent=23 // pred_check
          %p153 = pneg %p36
        $region26: #{tpu_custom_call.1} parent=23 // pred_check_branch
          %155 = sbr.rel (%p153) target = $region28
        $region27: #{tpu_custom_call.1} parent=23 // pred_region
          %s156 = sand.u32 %s26, 1
          %s157 = scalar_lea.sflag [#allocation3], %s156
          %s158 = sand.u32 %s26, 1
          %s159 = smul.addr %s158, 8
          %s160 = scalar_lea.vmem [#allocation2], %s159
          %162 = vsyncadd %s157, 0
          %s163 = smul.addr %s16, 8
          %s164 = scalar_lea.hbm %s0, %s163
          %s166 = sshll.u32 %s164, 4
          %s167 = int_to_ptr.hbm [resolvable:$true] %s166
          %s168 = sshll.u32 %s160, 4
          %s169 = int_to_ptr.vmem [resolvable:$true] %s168
          %171 = dma.hbm_to_vmem [thread:$0]  %s167, 128, %s169, %s157
        $region28: #{tpu_custom_call.1} parent=23 // pred_fallthru
          _
      $region24: #{tpu_custom_call.1} parent=5 // pred_fallthru
        _
      %p172 = scmp.le.s32.totalorder 1, %s16
      %p173 = scmp.lt.s32.totalorder %s16, 3
      %p174 = pnand %p172, %p173
      %p175 = pneg %p174
      // Predicated region
      $region29: #{tpu_custom_call.1} parent=5 // pred_check
        _
      $region30: #{tpu_custom_call.1} parent=5 // pred_check_branch
        %177 = sbr.rel (%p174) target = $region32
      $region31: #{tpu_custom_call.1} parent=5 // pred_region
        %s178 = ssub.s32 %s16, 1
        %s179 = sand.u32 %s29, 1
        %s180 = scalar_lea.sflag [#allocation3], %s179
        %s181 = sand.u32 %s29, 1
        %s182 = smul.addr %s181, 8
        %s183 = scalar_lea.vmem [#allocation2], %s182
        // Predicated region
        $region33: #{tpu_custom_call.1} parent=31 // pred_check
          %p184 = pneg %p42
        $region34: #{tpu_custom_call.1} parent=31 // pred_check_branch
          %186 = sbr.rel (%p184) target = $region36
        $region35: #{tpu_custom_call.1} parent=31 // pred_region
          %188 = dma.done %s180, 128
        $region36: #{tpu_custom_call.1} parent=31 // pred_fallthru
          _
        // Predicated region
        $region37: #{tpu_custom_call.1} parent=31 // pred_check
          %p189 = pneg %p63
        $region38: #{tpu_custom_call.1} parent=31 // pred_check_branch
          %191 = sbr.rel (%p189) target = $region40
        $region39: #{tpu_custom_call.1} parent=31 // pred_region
          %193 = dma.done [#allocation6], 64
        $region40: #{tpu_custom_call.1} parent=31 // pred_fallthru
          _
        // Predicated region
        $region41: #{tpu_custom_call.1} parent=31 // pred_check
          %p194 = pneg %p84
        $region42: #{tpu_custom_call.1} parent=31 // pred_check_branch
          %196 = sbr.rel (%p194) target = $region44
        $region43: #{tpu_custom_call.1} parent=31 // pred_region
          %198 = dma.done [#allocation6], 64
        $region44: #{tpu_custom_call.1} parent=31 // pred_fallthru
          _
        %s199 = sand.u32 %s29, 1
        %s200 = scalar_lea.sflag [#allocation3], %s199
        %s201 = sand.u32 %s29, 1
        %s202 = smul.addr %s201, 8
        %s203 = scalar_lea.vmem [#allocation2], %s202
        %p204 = pneg %p42
        %p205 = pneg %p39
        %p206 = pneg %p63
        %p207 = pneg %p60
        %p208 = pneg %p84
        %p209 = pneg %p81
        %p210 = pneg %p110
        %p211 = pneg %p107
        %s212 = sand.u32 %s97, 1
        %s213 = scalar_lea.sflag [#allocation4], %s212
        %s214 = sand.u32 %s97, 1
        %s215 = smul.addr %s214, 8
        %s216 = scalar_lea.vmem [#allocation8], %s215
        %v217 = vld [vmem:[%s183] sm:$0xff]
        %v218 = vld [vmem:[#allocation5] sm:$0xf]
        %v219 = vld [vmem:[#allocation7] sm:$0xf]
        %vm220 = vcmask 261120
        %v221 = vsel %vm220, %v217, 0.0
        %222 = vadd.xlane.f32.xlu0 %v221
        %v223 = vpop.xlane.xlu0 %222
        %v224 = vmul.f32 %v217, %v217
        %v225 = vsel %vm220, %v224, 0.0
        %226 = vadd.xlane.f32.xlu0 %v225
        %v227 = vpop.xlane.xlu0 %226
        %v228 = vmul.f32 %v223, 0.03125
        %v229 = vmul.f32 %v227, 0.03125
        %v230 = vmul.f32 %v228, %v228
        %v231 = vsub.f32 %v229, %v230
        %v232 = vmax.f32 %v231, 0.0
        %v233 = vadd.f32 %v232, 0.0
        %v234 = vrsqrt.pop %v233
        %v235 = vmul.f32 %v234, %v233
        %v236 = vmul.f32 %v235, %v234
        %v237 = vmul.f32 0.5, %v236
        %v238 = vsub.f32 1.5, %v237
        %v239 = vmul.f32 %v234, %v238
        %vm240 = vweird.f32 %v233
        %vm241 = vweird.f32 %v234
        %vm242 = vmor %vm240, %vm241
        %v243 = vsel %vm242, %v234, %v239
        %v244 = vsub.f32 %v217, %v228
        %v245 = vmul.f32 %v244, %v243
        %v246 = vperm.slane %v218, 0
        %v247 = vmul.f32 %v245, %v246
        %v248 = vperm.slane %v219, 0
        %v249 = vadd.f32 %v247, %v248
        %v250 = vsel %vm220, %v249, 0.0
        %251 = vadd.xlane.f32.xlu0 %v250
        %v252 = vpop.xlane.xlu0 %251
        %v253 = vmul.f32 %v249, %v249
        %v254 = vsel %vm220, %v253, 0.0
        %255 = vadd.xlane.f32.xlu0 %v254
        %v256 = vpop.xlane.xlu0 %255
        %v257 = vmul.f32 %v252, 0.03125
        %v258 = vmul.f32 %v256, 0.03125
        %v259 = vmul.f32 %v257, %v257
        %v260 = vsub.f32 %v258, %v259
        %v261 = vmax.f32 %v260, 0.0
        %v262 = vadd.f32 %v261, 1.0
        %v263 = vrsqrt.pop %v262
        %v264 = vmul.f32 %v263, %v262
        %v265 = vmul.f32 %v264, %v263
        %v266 = vmul.f32 0.5, %v265
        %v267 = vsub.f32 1.5, %v266
        %v268 = vmul.f32 %v263, %v267
        %vm269 = vweird.f32 %v262
        %vm270 = vweird.f32 %v263
        %vm271 = vmor %vm269, %vm270
        %v272 = vsel %vm271, %v263, %v268
        %v273 = vsub.f32 %v249, %v257
        %v274 = vmul.f32 %v273, %v272
        %v275 = vperm.slane %v218, 1
        %v276 = vmul.f32 %v274, %v275
        %v277 = vperm.slane %v219, 1
        %v278 = vadd.f32 %v276, %v277
        %v279 = vsel %vm220, %v278, 0.0
        %280 = vadd.xlane.f32.xlu0 %v279
        %v281 = vpop.xlane.xlu0 %280
        %v282 = vmul.f32 %v278, %v278
        %v283 = vsel %vm220, %v282, 0.0
        %284 = vadd.xlane.f32.xlu0 %v283
        %v285 = vpop.xlane.xlu0 %284
        %v286 = vmul.f32 %v281, 0.03125
        %v287 = vmul.f32 %v285, 0.03125
        %v288 = vmul.f32 %v286, %v286
        %v289 = vsub.f32 %v287, %v288
        %v290 = vmax.f32 %v289, 0.0
        %v291 = vadd.f32 %v290, 0.0
        %v292 = vrsqrt.pop %v291
        %v293 = vmul.f32 %v292, %v291
        %v294 = vmul.f32 %v293, %v292
        %v295 = vmul.f32 0.5, %v294
        %v296 = vsub.f32 1.5, %v295
        %v297 = vmul.f32 %v292, %v296
        %vm298 = vweird.f32 %v291
        %vm299 = vweird.f32 %v292
        %vm300 = vmor %vm298, %vm299
        %v301 = vsel %vm300, %v292, %v297
        %v302 = vsub.f32 %v278, %v286
        %v303 = vmul.f32 %v302, %v301
        %v304 = vperm.slane %v218, 2
        %v305 = vmul.f32 %v303, %v304
        %v306 = vperm.slane %v219, 2
        %v307 = vadd.f32 %v305, %v306
        %v308 = vsel %vm220, %v307, 0.0
        %309 = vadd.xlane.f32.xlu0 %v308
        %v310 = vpop.xlane.xlu0 %309
        %v311 = vmul.f32 %v307, %v307
        %v312 = vsel %vm220, %v311, 0.0
        %313 = vadd.xlane.f32.xlu0 %v312
        %v314 = vpop.xlane.xlu0 %313
        %v315 = vmul.f32 %v310, 0.03125
        %v316 = vmul.f32 %v314, 0.03125
        %v317 = vmul.f32 %v315, %v315
        %v318 = vsub.f32 %v316, %v317
        %v319 = vmax.f32 %v318, 0.0
        %v320 = vadd.f32 %v319, 1.0
        %v321 = vrsqrt.pop %v320
        %v322 = vmul.f32 %v321, %v320
        %v323 = vmul.f32 %v322, %v321
        %v324 = vmul.f32 0.5, %v323
        %v325 = vsub.f32 1.5, %v324
        %v326 = vmul.f32 %v321, %v325
        %vm327 = vweird.f32 %v320
        %vm328 = vweird.f32 %v321
        %vm329 = vmor %vm327, %vm328
        %v330 = vsel %vm329, %v321, %v326
        %v331 = vsub.f32 %v307, %v315
        %v332 = vmul.f32 %v331, %v330
        %v333 = vperm.slane %v218, 3
        %v334 = vmul.f32 %v332, %v333
        %v335 = vperm.slane %v219, 3
        %v336 = vadd.f32 %v334, %v335
        %337 = vst.msk [vmem:[%s216] sm:$0xff] %vm220, %v336
        %s338 = sand.u32 %s97, 1
        %s339 = scalar_lea.sflag [#allocation4], %s338
        %s340 = sand.u32 %s97, 1
        %s341 = smul.addr %s340, 8
        %s342 = scalar_lea.vmem [#allocation8], %s341
        // Predicated region
        $region45: #{tpu_custom_call.1} parent=31 // pred_check
          %p343 = pneg %p107
        $region46: #{tpu_custom_call.1} parent=31 // pred_check_branch
          %345 = sbr.rel (%p343) target = $region48
        $region47: #{tpu_custom_call.1} parent=31 // pred_region
          %347 = vsyncadd %s339, 0
          %s348 = smul.addr %s21, 8
          %s349 = scalar_lea.hbm %s3, %s348
          %s351 = sshll.u32 %s342, 4
          %s352 = int_to_ptr.vmem [resolvable:$true] %s351
          %s353 = sshll.u32 %s349, 4
          %s354 = int_to_ptr.hbm [resolvable:$true] %s353
          %356 = dma.vmem_to_hbm [thread:$0]  %s352, 128, %s354, %s339
        $region48: #{tpu_custom_call.1} parent=31 // pred_fallthru
          _
      $region32: #{tpu_custom_call.1} parent=5 // pred_fallthru
        _
      %p357 = scmp.le.s32.totalorder 2, %s16
      // Predicated region
      $region49: #{tpu_custom_call.1} parent=5 // pred_check
        %p358 = pneg %p357
      $region50: #{tpu_custom_call.1} parent=5 // pred_check_branch
        %360 = sbr.rel (%p358) target = $region52
      $region51: #{tpu_custom_call.1} parent=5 // pred_region
        %s361 = ssub.s32 %s16, 2
        // Predicated region
        $region53: #{tpu_custom_call.1} parent=51 // pred_check
          %p362 = pneg %p113
        $region54: #{tpu_custom_call.1} parent=51 // pred_check_branch
          %364 = sbr.rel (%p362) target = $region56
        $region55: #{tpu_custom_call.1} parent=51 // pred_region
          %s365 = sand.u32 %s98, 1
          %s366 = scalar_lea.sflag [#allocation4], %s365
          %s367 = sand.u32 %s98, 1
          %s368 = smul.addr %s367, 8
          %s369 = scalar_lea.vmem [#allocation8], %s368
          %371 = dma.done %s366, 128
        $region56: #{tpu_custom_call.1} parent=51 // pred_fallthru
          _
      $region52: #{tpu_custom_call.1} parent=5 // pred_fallthru
        _
    $region6: #{tpu_custom_call.1} parent=1 // loop_footer
      %s20 = sadd.s32 1, %s16
    $region7: #{tpu_custom_call.1} parent=1 // loop_footer_branch
      %15 = sbr.rel target = $region3
    $region8: #{tpu_custom_call.1} parent=1 // loop_exit
      _
    %372 = vsyncpa [#allocation3], 1
    %s373 = scalar_lea.sflag [#allocation3], 1
    %374 = vsyncpa %s373, 1
    %375 = vsyncpa [#allocation6], 1
    %376 = vsyncpa [#allocation4], 1
    %s377 = scalar_lea.sflag [#allocation4], 1
    %378 = vsyncpa %s377, 1

</llo_original>
